<compile_context>
chip_gen: v7x
topology: tpu7x:2x2x1
jax: 0.10.0
libtpu: 0.0.40
codegen_flags: <defaults>
</compile_context>

<pallas_src>
import functools

import jax
import jax.numpy as jnp
import numpy as np
from jax.experimental import pallas as pl
from jax.experimental.pallas import tpu as pltpu

_LANE = 128


# --------------------------------------------------------------------------- #
# Host-side constants (cached per static config)
# --------------------------------------------------------------------------- #
@functools.lru_cache(maxsize=32)
def _bases(T, pred_len, low_freq):
    """Precompute all data-independent trig bases in float64 numpy."""
    t_total = T + pred_len
    n_hi = T // 2 if T % 2 == 0 else T // 2 + 1
    freqs_n = np.arange(low_freq, n_hi)
    F = int(freqs_n.size)

    t_idx = np.arange(T)
    ang_dft = 2.0 * np.pi * np.outer(freqs_n, t_idx) / T            # (F, T)
    Cdft, Sdft = np.cos(ang_dft), np.sin(ang_dft)                   # Re / -Im bases

    tau = np.arange(t_total)
    ang_ex = 2.0 * np.pi * np.outer(tau, freqs_n) / T               # (t_total, F)
    Bc, Bs = np.cos(ang_ex), np.sin(ang_ex)

    scale = 2.0 / T
    M = scale * (Bc @ Cdft + Bs @ Sdft)                             # (t_total, T) fused "keep all"
    CS = np.concatenate([Cdft, Sdft], axis=0)                       # (2F, T): [Re ; -Im]
    BcBs = scale * np.concatenate([Bc, Bs], axis=1)                 # (t_total, 2F), scale folded in
    return F, M, CS, BcBs


def _vmem_capacity_bytes():
    try:
        cap = int(getattr(pltpu.get_tpu_info(), "vmem_capacity_bytes", 0))
        if cap > 0:
            return cap
    except Exception:
        pass
    return 64 * 1024 * 1024   # conservative fallback: v7x per-TC physical VMEM


def _pick_lane_tile(lanes, per_lane_bytes, resident_bytes, budget, other_grid):
    """Largest multiple-of-128 divisor of `lanes` whose blocks fit the VMEM budget.

    Prefers a tile leaving >= 2 total grid steps (so v7x's 2nd TensorCore is used).
    """
    cands = [t for t in range(_LANE, lanes + 1, _LANE) if lanes % t == 0] or [lanes]
    cands.sort(reverse=True)
    fitting = [t for t in cands if resident_bytes + per_lane_bytes * t <= budget]
    if not fitting:
        return cands[-1]
    for t in fitting:
        if other_grid * (lanes // t) >= 2:
            return t
    return fitting[0]


# --------------------------------------------------------------------------- #
# Kernels (all refs seen by the body are 2D (rows, lane_tile))
# --------------------------------------------------------------------------- #
def _fused_kernel(m_ref, x_ref, o_ref, *, mxu_dtype):
    # keep-all path: out = M @ x, M = (2/T)*(Bc@Cdft + Bs@Sdft) precomputed.
    x = x_ref[...].astype(mxu_dtype)
    o_ref[...] = jnp.dot(m_ref[...], x,
                         preferred_element_type=jnp.float32).astype(o_ref.dtype)


def _dft_kernel(cs_ref, x_ref, reim_ref, pw_ref, *, n_freq, mxu_dtype):
    # single matmul producing stacked [Re ; -Im]; |X|^2 from the f32 accumulator.
    x = x_ref[...].astype(mxu_dtype)
    reim = jnp.dot(cs_ref[...], x, preferred_element_type=jnp.float32)   # (2F, tile)
    reim_ref[...] = reim.astype(reim_ref.dtype)
    re, imn = reim[:n_freq, :], reim[n_freq:, :]
    pw_ref[...] = re * re + imn * imn                                    # f32, same order as |X|


def _extrap_kernel(bcbs_ref, reim_ref, mask_ref, o_ref, *, mxu_dtype):
    # single masked matmul with contraction depth 2F (scale folded into bcbs).
    masked = (reim_ref[...] * mask_ref[...]).astype(mxu_dtype)
    o_ref[...] = jnp.dot(bcbs_ref[...], masked,
                         preferred_element_type=jnp.float32).astype(o_ref.dtype)


# --------------------------------------------------------------------------- #
# BlockSpec helpers
# --------------------------------------------------------------------------- #
def _lane_spec(batched, rows, tile):
    if batched:
        return pl.BlockSpec((pl.Squeezed(), rows, tile), lambda b, j: (b, 0, j))
    return pl.BlockSpec((rows, tile), lambda j: (0, j))


def _const_spec(shape, batched):
    if batched:
        return pl.BlockSpec(shape, lambda b, j: (0, 0))
    return pl.BlockSpec(shape, lambda j: (0, 0))


# --------------------------------------------------------------------------- #
# Wrapper
# --------------------------------------------------------------------------- #
def fourier_layer(x, *, pred_len, k=None, low_freq=1, mxu_dtype=jnp.bfloat16):
    """x: (B, T, D) real.  Returns (B, T + pred_len, D)."""
    B, T, D = x.shape
    out_dtype = x.dtype
    t_total = T + pred_len
    F, M_np, CS_np, BcBs_np = _bases(T, pred_len, low_freq)

    keep_all = (k is None) or (int(k) >= F)
    kk = F if keep_all else max(1, min(int(k), F))

    mxu_bytes = np.dtype(mxu_dtype).itemsize
    x_bytes = np.dtype(x.dtype).itemsize
    out_bytes = np.dtype(out_dtype).itemsize

    cap = _vmem_capacity_bytes()
    budget = int(0.40 * cap)
    vmem_limit = int(0.50 * cap)

    # Layout: native (B, T, D) when D is already lane-dense (no HBM transposes);
    # otherwise fall back to folding batch into lanes and padding to 128.
    batched = (D % _LANE == 0)
    if batched:
        lanes, grid_b = D, B
        x_lan = x                                             # (B, T, D)
    else:
        N = B * D
        lanes = -(-N // _LANE) * _LANE
        grid_b = 1
        x_lan = jnp.transpose(x, (1, 0, 2)).reshape(T, N)     # (T, N) fallback fold
        if lanes != N:
            x_lan = jnp.pad(x_lan, ((0, 0), (0, lanes - N)))

    def grid_of(tile):
        return (grid_b, lanes // tile) if batched else (lanes // tile,)

    def cparams():
        sem = ("parallel",) * (2 if batched else 1)
        return pltpu.CompilerParams(dimension_semantics=sem,
                                    vmem_limit_bytes=vmem_limit)

    if keep_all:
        # Whole layer folds into one constant operator: out = M @ x (one matmul).
        per_lane = 2 * (T * x_bytes + t_total * out_bytes)
        resident = 2 * t_total * T * mxu_bytes + (1 << 20)
        tile = _pick_lane_tile(lanes, per_lane, resident, budget, grid_b)
        M = jnp.asarray(M_np, dtype=mxu_dtype)
        out_shape = (B, t_total, D) if batched else (t_total, lanes)
        o = pl.pallas_call(
            functools.partial(_fused_kernel, mxu_dtype=mxu_dtype),
            out_shape=jax.ShapeDtypeStruct(out_shape, out_dtype),
            grid=grid_of(tile),
            in_specs=[_const_spec((t_total, T), batched),
                      _lane_spec(batched, T, tile)],
            out_specs=_lane_spec(batched, t_total, tile),
            compiler_params=cparams(),
        )(M, x_lan)
    else:
        # ---- stage 1: band-limited DFT -> stacked [Re ; -Im] + |X|^2 ----------
        per_lane = 2 * (T * x_bytes + 2 * F * mxu_bytes + F * 4)
        resident = 2 * (2 * F) * T * mxu_bytes + (1 << 20)
        tile1 = _pick_lane_tile(lanes, per_lane, resident, budget, grid_b)
        CS = jnp.asarray(CS_np, dtype=mxu_dtype)
        reim_shape = (B, 2 * F, D) if batched else (2 * F, lanes)
        pw_shape = (B, F, D) if batched else (F, lanes)
        reim, power = pl.pallas_call(
            functools.partial(_dft_kernel, n_freq=F, mxu_dtype=mxu_dtype),
            out_shape=(jax.ShapeDtypeStruct(reim_shape, mxu_dtype),
                       jax.ShapeDtypeStruct(pw_shape, jnp.float32)),
            grid=grid_of(tile1),
            in_specs=[_const_spec((2 * F, T), batched),
                      _lane_spec(batched, T, tile1)],
            out_specs=(_lane_spec(batched, 2 * F, tile1),
                       _lane_spec(batched, F, tile1)),
            compiler_params=cparams(),
        )(CS, x_lan)

        # ---- exact top-k per (batch, feature) column; iota-compare mask built
        #      directly in the stacked (·, 2F, lanes) orientation (no scatter,
        #      no mask transpose), duplicated over the [Re ; -Im] stacking.
        if batched:
            _, idx = jax.lax.top_k(jnp.transpose(power, (0, 2, 1)), kk)     # (B, D, kk)
            fidx = jnp.arange(2 * F, dtype=idx.dtype) % F
            mask = (idx[:, None, :, :] == fidx[None, :, None, None]).any(-1)  # (B, 2F, D)
        else:
            _, idx = jax.lax.top_k(power.T, kk)                              # (lanes, kk)
            fidx = jnp.arange(2 * F, dtype=idx.dtype) % F
            mask = (idx[None, :, :] == fidx[:, None, None]).any(-1)          # (2F, lanes)
        mask = mask.astype(mxu_dtype)

        # ---- stage 2: masked harmonic extrapolation (single K=2F matmul) ------
        per_lane = 2 * (2 * F * mxu_bytes * 2 + t_total * out_bytes)
        resident = 2 * t_total * (2 * F) * mxu_bytes + (1 << 20)
        tile2 = _pick_lane_tile(lanes, per_lane, resident, budget, grid_b)
        BcBs = jnp.asarray(BcBs_np, dtype=mxu_dtype)
        out_shape = (B, t_total, D) if batched else (t_total, lanes)
        o = pl.pallas_call(
            functools.partial(_extrap_kernel, mxu_dtype=mxu_dtype),
            out_shape=jax.ShapeDtypeStruct(out_shape, out_dtype),
            grid=grid_of(tile2),
            in_specs=[_const_spec((t_total, 2 * F), batched),
                      _lane_spec(batched, 2 * F, tile2),
                      _lane_spec(batched, 2 * F, tile2)],
            out_specs=_lane_spec(batched, t_total, tile2),
            compiler_params=cparams(),
        )(BcBs, reim, mask)

    if batched:
        return o
    o = o[:, :B * D]
    return jnp.transpose(o.reshape(t_total, B, D), (1, 0, 2))


# --------------------------------------------------------------------------- #
# Pure-JAX reference mirroring the PyTorch FourierLayer forward
# --------------------------------------------------------------------------- #
def _reference(x, *, pred_len, k=None, low_freq=1):
    B, T, D = x.shape
    xf = jnp.fft.rfft(x.astype(jnp.float32), axis=1)
    if T % 2 == 0:
        xf = xf[:, low_freq:-1]
        f = jnp.fft.rfftfreq(T)[low_freq:-1]
    else:
        xf = xf[:, low_freq:]
        f = jnp.fft.rfftfreq(T)[low_freq:]
    F = xf.shape[1]
    kk = F if k is None else min(int(k), F)

    amp_bfd = jnp.abs(xf)                                             # (B, F, D)
    _, idx = jax.lax.top_k(jnp.transpose(amp_bfd, (0, 2, 1)), kk)     # (B, D, kk)
    xf_sel = jnp.take_along_axis(jnp.transpose(xf, (0, 2, 1)), idx, axis=-1)
    f_sel = f[idx]                                                    # (B, D, kk)

    t_total = T + pred_len
    tau = jnp.arange(t_total, dtype=jnp.float32)
    amp = jnp.abs(xf_sel) / T
    phase = jnp.angle(xf_sel)
    xt = 2.0 * amp[..., None] * jnp.cos(
        2.0 * jnp.pi * f_sel[..., None] * tau + phase[..., None])     # (B, D, kk, tt)
    return jnp.transpose(jnp.sum(xt, axis=2), (0, 2, 1))              # (B, tt, D)


if __name__ == "__main__":
    pred_len, low_freq = 8, 1

    # ---- Case 1: small d_model -> folded-lane fallback path; f32 MXU for exact parity.
    B, T, D = 2, 16, 32
    x = jax.random.normal(jax.random.PRNGKey(0), (B, T, D), dtype=jnp.float32)

    out = jax.block_until_ready(fourier_layer(
        x, pred_len=pred_len, k=None, low_freq=low_freq, mxu_dtype=jnp.float32))
    ref = _reference(x, pred_len=pred_len, k=None, low_freq=low_freq)
    assert out.shape == (B, T + pred_len, D)
    np.testing.assert_allclose(np.asarray(out), np.asarray(ref), rtol=5e-4, atol=5e-4)

    out = jax.block_until_ready(fourier_layer(
        x, pred_len=pred_len, k=3, low_freq=low_freq, mxu_dtype=jnp.float32))
    ref = _reference(x, pred_len=pred_len, k=3, low_freq=low_freq)
    np.testing.assert_allclose(np.asarray(out), np.asarray(ref), rtol=5e-4, atol=5e-4)

    # ---- Case 2: lane-dense d_model -> native (B, T, D) layout, no wrapper transposes.
    B2, T2, D2 = 2, 16, 128
    x2 = jax.random.normal(jax.random.PRNGKey(1), (B2, T2, D2), dtype=jnp.float32)

    # Default bf16 MXU operands (f32 accumulation): looser tolerance for the bf16 path.
    out2 = jax.block_until_ready(fourier_layer(
        x2, pred_len=pred_len, k=None, low_freq=low_freq))
    ref2 = _reference(x2, pred_len=pred_len, k=None, low_freq=low_freq)
    assert out2.shape == (B2, T2 + pred_len, D2)
    np.testing.assert_allclose(np.asarray(out2), np.asarray(ref2), rtol=5e-2, atol=5e-2)

    # bf16 top-k: exercised for compile/run only -- near-|X| ties can legitimately
    # select different frequencies than the f32 reference, so just sanity-check.
    out3 = jax.block_until_ready(fourier_layer(
        x2, pred_len=pred_len, k=3, low_freq=low_freq))
    assert out3.shape == (B2, T2 + pred_len, D2)
    assert bool(jnp.isfinite(out3).all())

    # f32 top-k on the native layout: exact parity check.
    out4 = jax.block_until_ready(fourier_layer(
        x2, pred_len=pred_len, k=3, low_freq=low_freq, mxu_dtype=jnp.float32))
    ref4 = _reference(x2, pred_len=pred_len, k=3, low_freq=low_freq)
    np.testing.assert_allclose(np.asarray(out4), np.asarray(ref4), rtol=5e-4, atol=5e-4)

    print("KERNEL_OK")
</pallas_src>

<mosaic_0001>
module attributes {stable_mosaic.version = 11 : i64} {
  func.func @_fused_kernel(%arg0: i32, %arg1: memref<24x16xf32, #tpu.memory_space<vmem>>, %arg2: memref<16x128xf32, #tpu.memory_space<vmem>>, %arg3: memref<24x128xf32, #tpu.memory_space<vmem>>) attributes {dimension_semantics = [#tpu.dimension_semantics<parallel>], iteration_bounds = array<i64: 1>, scalar_prefetch = 0 : i64, scratch_operands = 0 : i64, tpu.core_type = #tpu.core_type<tc>, window_params = [{pipeline_mode = #tpu.pipeline_mode<synchronous>, transform_indices = @transform_0, window_bounds = array<i64: 24, 16>}, {transform_indices = @transform_1, window_bounds = array<i64: 16, 128>}, {transform_indices = @transform_2, window_bounds = array<i64: 24, 128>}]} {
    %c0 = arith.constant 0 : index
    %c0_0 = arith.constant 0 : index
    %0 = vector.load %arg2[%c0, %c0_0] : memref<16x128xf32, #tpu.memory_space<vmem>>, vector<16x128xf32>
    %c0_1 = arith.constant 0 : index
    %c0_2 = arith.constant 0 : index
    %1 = vector.load %arg1[%c0_1, %c0_2] : memref<24x16xf32, #tpu.memory_space<vmem>>, vector<24x16xf32>
    %cst = arith.constant dense<0.000000e+00> : vector<24x128xf32>
    %2 = tpu.matmul %1, %0, %cst {dimension_numbers = #tpu.dot_dimension_numbers<[1], [0], [0], [1], [0, 0, 1, 1], [], []>} : vector<24x16xf32>, vector<16x128xf32>, vector<24x128xf32> -> vector<24x128xf32>
    %c0_3 = arith.constant 0 : index
    %c0_4 = arith.constant 0 : index
    %3 = vector.load %arg3[%c0_3, %c0_4] : memref<24x128xf32, #tpu.memory_space<vmem>>, vector<24x128xf32>
    tpu.vector_store %arg3[%c0_3, %c0_4], %2 {strides = array<i32>} : memref<24x128xf32, #tpu.memory_space<vmem>>, vector<24x128xf32>,
    return
  }
  func.func @transform_0(%arg0: i32) -> (i32, i32) {
    %c0_i32 = arith.constant 0 : i32
    %c0_i32_0 = arith.constant 0 : i32
    %c0_i32_1 = arith.constant 0 : i32
    return %c0_i32, %c0_i32_0 : i32, i32
  }
  func.func @transform_1(%arg0: i32) -> (i32, i32) {
    %c0_i32 = arith.constant 0 : i32
    %c0_i32_0 = arith.constant 0 : i32
    return %c0_i32, %arg0 : i32, i32
  }
  func.func @transform_2(%arg0: i32) -> (i32, i32) {
    %c0_i32 = arith.constant 0 : i32
    %c0_i32_0 = arith.constant 0 : i32
    return %c0_i32, %arg0 : i32, i32
  }
}

</mosaic_0001>

<llo_original>
// kernel: tpu_custom_call.1
$region0: #{tpu_custom_call.1}
  #allocation0 [shape = 'u32[]', space=smem, size = 0x4, offset = 0x4, fixed_abs, tag = 'smem constant byte address 0x4 - core index']
  #allocation1 [shape = 'u32[144,128]{1,0:T(1,128)}', space=vmem, size = 0x12000, scoped, tag = 'internal scratch']
  %s0 = inlined_call_operand.vmem [shape: f32[24,16], index: 0, kind: input, shape index: {}]
  %s1 = inlined_call_operand.vmem [shape: f32[16,128], index: 1, kind: input, shape index: {}]
  %s2 = inlined_call_operand.hbm [shape: f32[24,128], index: 2, kind: output, shape index: {}]
  %s3 = sld [smem:[#allocation0]]
  $region18: #{tpu_custom_call.1} parent=0
    _
  %s5 = ssub.s32 1, %s3
  %s6 = scalar_select 0, %s5, %s3
  $region1: #{tpu_custom_call.1} parent=0
    #allocation2 [shape = 'u8[12288]{0}', space=vmem, size = 0x3000, scoped, tag = 'output window, operand 0, single buffered']
    #allocation3 [shape = 's32[1]{0}', space=sflag, size = 0x4, scoped, tag = 'scoped memory for tpu_custom_call.1']
    %7 = vsyncpa [#allocation3], 0
    // Predicated region
    $region2: #{tpu_custom_call.1} parent=1 // pred_check
      _
    $region3: #{tpu_custom_call.1} parent=1 // pred_check_branch
      %9 = sbr.rel (0) target = $region5
    $region4: #{tpu_custom_call.1} parent=1 // pred_region
      _
    $region5: #{tpu_custom_call.1} parent=1 // pred_fallthru
      _
    // Predicated region
    $region6: #{tpu_custom_call.1} parent=1 // pred_check
      _
    $region7: #{tpu_custom_call.1} parent=1 // pred_check_branch
      %11 = sbr.rel (0) target = $region9
    $region8: #{tpu_custom_call.1} parent=1 // pred_region
      _
    $region9: #{tpu_custom_call.1} parent=1 // pred_fallthru
      _
    %v12 = vld [vmem:[%s1] sm:$0xff]
    %v13 = vld [vmem:[%s1 + $0x8] sm:$0xff]
    %v14 = vld [vmem:[%s0] sm:$0xff]
    %v15 = vld [vmem:[%s0 + $0x8] sm:$0xff]
    %v16 = vld [vmem:[%s0 + $0x10] sm:$0xff]
    %vm17 = vcmask 130048
    %v19 = vsel %vm17, %v14, 0
    %v22 = vsel %vm17, %v15, 0
    %v25 = vsel %vm17, %v16, 0
    %27 = vmatprep.subr.mxu0 0.0
    %28 = vmatpush1.msra.mxu0 %v12
    %29 = vmatprep.subr.mxu0 0.0
    %30 = vmatpush1.msra.mxu0 %v13
    %31 = vmatprep.subr.mxu0 0.0
    %32 = vmatpush1.msra.mxu0 0.0
    %33 = vmatprep.subr.mxu0 0.0
    %34 = vmatpush1.msra.mxu0 0.0
    %35 = vmatprep.subr.mxu0 0.0
    %36 = vmatpush1.msra.mxu0 0.0
    %37 = vmatprep.subr.mxu0 0.0
    %38 = vmatpush1.msra.mxu0 0.0
    %39 = vmatprep.subr.mxu0 0.0
    %40 = vmatpush1.msra.mxu0 0.0
    %41 = vmatprep.subr.mxu0 0.0
    %42 = vmatpush1.msra.mxu0 0.0
    %43 = vmatprep.subr.mxu0 0.0
    %44 = vmatpush1.msra.mxu0 0.0
    %45 = vmatprep.subr.mxu0 0.0
    %46 = vmatpush1.msra.mxu0 0.0
    %47 = vmatprep.subr.mxu0 0.0
    %48 = vmatpush1.msra.mxu0 0.0
    %49 = vmatprep.subr.mxu0 0.0
    %50 = vmatpush1.msra.mxu0 0.0
    %51 = vmatprep.subr.mxu0 0.0
    %52 = vmatpush1.msra.mxu0 0.0
    %53 = vmatprep.subr.mxu0 0.0
    %54 = vmatpush1.msra.mxu0 0.0
    %55 = vmatprep.subr.mxu0 0.0
    %56 = vmatpush1.msra.mxu0 0.0
    %57 = vmatprep.subr.mxu0 0.0
    %58 = vmatpush1.msra.mxu0 0.0
    %59 = vmatprep.subr.mxu0 0.0
    %60 = vmatpush1.msra.mxu0 0.0
    %61 = vmatprep.subr.mxu0 0.0
    %62 = vmatpush1.msra.mxu0 0.0
    %63 = vmatprep.subr.mxu0 0.0
    %64 = vmatpush1.msra.mxu0 0.0
    %65 = vmatprep.subr.mxu0 0.0
    %66 = vmatpush1.msra.mxu0 0.0
    %67 = vmatprep.subr.mxu0 0.0
    %68 = vmatpush1.msra.mxu0 0.0
    %69 = vmatprep.subr.mxu0 0.0
    %70 = vmatpush1.msra.mxu0 0.0
    %71 = vmatprep.subr.mxu0 0.0
    %72 = vmatpush1.msra.mxu0 0.0
    %73 = vmatprep.subr.mxu0 0.0
    %74 = vmatpush1.msra.mxu0 0.0
    %75 = vmatprep.subr.mxu0 0.0
    %76 = vmatpush1.msra.mxu0 0.0
    %77 = vmatprep.subr.mxu0 0.0
    %78 = vmatpush1.msra.mxu0 0.0
    %79 = vmatprep.subr.mxu0 0.0
    %80 = vmatpush1.msra.mxu0 0.0
    %81 = vmatprep.subr.mxu0 0.0
    %82 = vmatpush1.msra.mxu0 0.0
    %83 = vmatprep.subr.mxu0 0.0
    %84 = vmatpush1.msra.mxu0 0.0
    %85 = vmatprep.subr.mxu0 0.0
    %86 = vmatpush1.msra.mxu0 0.0
    %87 = vmatprep.subr.mxu0 0.0
    %88 = vmatpush1.msra.mxu0 0.0
    %89 = vmatprep.subr.mxu0 0.0
    %90 = vmatpush1.msra.mxu0 0.0
    %91 = vmatprep.mubr.f32.mxu0 0.0
    %92 = vmatmul.mubr.f32.gmra.mrb[0].mxu0 %v19
    %v93 = vpop.f32.mrb[0].mxu0
    %v94 = vadd.f32 0.0, %v93
    %v95 = vpop.f32.mrb[0].mxu0
    %96 = vmatprep.mubr.f32.mxu0 0.0
    %97 = vmatmul.mubr.f32.gmra.mrb[0].mxu0 %v22
    %v98 = vpop.f32.mrb[0].mxu0
    %v99 = vadd.f32 0.0, %v98
    %v100 = vpop.f32.mrb[0].mxu0
    %101 = vmatprep.mubr.f32.mxu0 0.0
    %102 = vmatmul.mubr.f32.gmra.mrb[0].mxu0 %v25
    %v103 = vpop.f32.mrb[0].mxu0
    %v104 = vadd.f32 0.0, %v103
    %v105 = vpop.f32.mrb[0].mxu0
    %106 = vdwg.mxu0
    %107 = vst [vmem:[#allocation2] sm:$0xff] %v94
    %108 = vst [vmem:[#allocation2 + $0x8] sm:$0xff] %v99
    %109 = vst [vmem:[#allocation2 + $0x10] sm:$0xff] %v104
    // Predicated region
    $region10: #{tpu_custom_call.1} parent=1 // pred_check
      _
    $region11: #{tpu_custom_call.1} parent=1 // pred_check_branch
      %111 = sbr.rel (0) target = $region13
    $region12: #{tpu_custom_call.1} parent=1 // pred_region
      %s113 = ssub.s32 384, 384
      %114 = vsyncadd [#allocation3], %s113
      %s115 = sshll.u32 [#allocation2], 4
      %s116 = int_to_ptr.vmem [resolvable:$true] %s115
      %121 = dma.vmem_to_hbm [thread:$0]  %s116, 384, %s2, [#allocation3], 128, 128, 8
    $region13: #{tpu_custom_call.1} parent=1 // pred_fallthru
      _
    // Predicated region
    $region14: #{tpu_custom_call.1} parent=1 // pred_check
      _
    $region15: #{tpu_custom_call.1} parent=1 // pred_check_branch
      %123 = sbr.rel (0) target = $region17
    $region16: #{tpu_custom_call.1} parent=1 // pred_region
      %124 = dma.done [#allocation3], 384
    $region17: #{tpu_custom_call.1} parent=1 // pred_fallthru
      _
    %125 = vsyncpa [#allocation3], 1

</llo_original>
